<compile_context>
chip_gen: v5e
topology: v5e:2x2
jax: 0.10.0
libtpu: 0.0.40
codegen_flags: <defaults>
</compile_context>

<pallas_src>
import functools

import jax
import jax.numpy as jnp
from jax.experimental import pallas as pl
from jax.experimental.pallas import tpu as pltpu


def _round_up(x: int, m: int) -> int:
    return ((x + m - 1) // m) * m


def _cdiv(a: int, b: int) -> int:
    return -(-a // b)


def _vmem_budget_bytes() -> int:
    """Generation-aware scoped-VMEM budget.

    v5e/v6e: 128 MiB physical -> allow ~100 MiB.  v7x: 64 MiB physical ->
    cap at 48 MiB to leave headroom for compiler scratch."""
    try:
        cap = int(pltpu.get_tpu_info().vmem_capacity_bytes)
    except Exception:  # conservative fallback (v7x-sized)
        cap = 64 << 20
    if cap >= (128 << 20):
        return 100 << 20
    return min(48 << 20, max(cap - (16 << 20), 16 << 20))


_VMEM_BUDGET = _vmem_budget_bytes()


# ---------------------------------------------------------------------------
# Kernels
# ---------------------------------------------------------------------------
def _vi_rsample_resident_kernel(eps_ref, lt_ref, mean_ref, out_ref):
    """out = eps @ Lt + mean, with Lt fully resident in VMEM.  Grid = (S_tiles,)."""
    out_ref[...] = (
        jnp.dot(eps_ref[...], lt_ref[...], preferred_element_type=jnp.float32)
        + mean_ref[...]
    ).astype(out_ref.dtype)


def _vi_rsample_tiled_kernel(eps_ref, lt_ref, mean_ref, out_ref):
    """Tiled fallback for large M.  Grid = (S_tiles, N_tiles, K_tiles).

    Accumulates directly into the f32 output block (block index constant over
    k) and skips all-zero Lt blocks: Lt = tril(chol).T is upper triangular, so
    with TK == TN every block with k > j is zero."""
    j = pl.program_id(1)
    k = pl.program_id(2)

    @pl.when(k == 0)
    def _():
        out_ref[...] = jnp.broadcast_to(mean_ref[...], out_ref.shape)

    @pl.when(k <= j)
    def _():
        out_ref[...] += jnp.dot(
            eps_ref[...], lt_ref[...], preferred_element_type=jnp.float32
        )


# ---------------------------------------------------------------------------
# Wrapper
# ---------------------------------------------------------------------------
@functools.partial(jax.jit, static_argnames=("compute_dtype",))
def vi_sampler_forward(eps, chol, mean, *, compute_dtype=jnp.float32):
    """Reparameterized MVN sample: out[s, :] = tril(chol) @ eps[s, :] + mean.

    eps: (S, M) base noise, chol: (M, M) raw Cholesky factor (tril applied
    here), mean: (M,).  Returns (S, M) float32 samples.

    compute_dtype=jnp.bfloat16 halves eps/Lt HBM traffic and runs the MXU at
    full rate on v6e/v7x (accumulation stays f32); the sampled distribution is
    perturbed at bf16 precision, so keep f32 if the ELBO is sensitive."""
    S, M = eps.shape
    compute_dtype = jnp.dtype(compute_dtype)
    in_elt = compute_dtype.itemsize
    sub = 16 if compute_dtype == jnp.dtype(jnp.bfloat16) else 8

    # ---- one-time glue (outside the hot path): mask + transpose -------------
    lt = jnp.tril(chol).T  # (M, M) upper triangular: kernel contracts eps @ Lt

    # ---- lane-dense feature axis --------------------------------------------
    M_pad = _round_up(M, 128)

    # ---- sample-axis tile: big tiles for the HBM roofline, >=2 tiles so the
    # second TensorCore on v7x has work, divisor-friendly so S_pad ~ S --------
    S_aligned = _round_up(max(S, 1), sub)
    max_ts = 512
    n_s_tiles = max(_cdiv(S_aligned, max_ts), 2 if S_aligned >= 2 * sub else 1)
    TS = _round_up(_cdiv(S_aligned, n_s_tiles), sub)
    S_pad = _round_up(S_aligned, TS)

    # ---- pad / cast only when needed ----------------------------------------
    if (S_pad, M_pad) == (S, M):
        eps_p = eps
    else:
        eps_p = jnp.zeros((S_pad, M_pad), eps.dtype).at[:S, :M].set(eps)
    if M_pad == M:
        lt_p = lt
        mean_p = mean.reshape(1, M).astype(jnp.float32)
    else:
        lt_p = jnp.zeros((M_pad, M_pad), lt.dtype).at[:M, :M].set(lt)
        mean_p = (
            jnp.zeros((1, M_pad), jnp.float32).at[0, :M].set(mean.astype(jnp.float32))
        )
    if eps_p.dtype != compute_dtype:
        eps_p = eps_p.astype(compute_dtype)
    if lt_p.dtype != compute_dtype:
        lt_p = lt_p.astype(compute_dtype)

    # ---- resident-Lt fast path when everything fits the VMEM budget ---------
    resident_bytes = (
        2 * M_pad * M_pad * in_elt  # Lt (pipeline still double-buffers)
        + 2 * TS * M_pad * in_elt   # eps blocks
        + 2 * TS * M_pad * 4        # f32 output blocks
        + 2 * M_pad * 4             # mean blocks
    )
    use_resident = resident_bytes <= _VMEM_BUDGET

    if use_resident:
        grid = (S_pad // TS,)
        kernel = _vi_rsample_resident_kernel
        in_specs = [
            pl.BlockSpec((TS, M_pad), lambda i: (i, 0)),        # eps
            pl.BlockSpec((M_pad, M_pad), lambda i: (0, 0)),     # Lt: DMA'd once, resident
            pl.BlockSpec((1, M_pad), lambda i: (0, 0)),         # mean
        ]
        out_specs = pl.BlockSpec((TS, M_pad), lambda i: (i, 0))
        dim_sem = ("parallel",)
        lt_hbm_bytes = M_pad * M_pad * in_elt
    else:
        TN = 256 if M_pad % 256 == 0 else 128
        TK = TN  # TK == TN required for the triangular block skip
        grid = (S_pad // TS, M_pad // TN, M_pad // TK)
        kernel = _vi_rsample_tiled_kernel
        in_specs = [
            # eps: freeze the K index once k > j (the dot is skipped there)
            pl.BlockSpec((TS, TK), lambda i, j, k: (i, jnp.minimum(k, j))),
            # Lt: blocks with k > j are all-zero -> freeze index, no re-DMA
            pl.BlockSpec((TK, TN), lambda i, j, k: (jnp.minimum(k, j), j)),
            pl.BlockSpec((1, TN), lambda i, j, k: (0, j)),
        ]
        out_specs = pl.BlockSpec((TS, TN), lambda i, j, k: (i, j))
        dim_sem = ("parallel", "parallel", "arbitrary")
        n_k = M_pad // TK
        # only the upper-triangular blocks are streamed, once per sample tile
        lt_hbm_bytes = (S_pad // TS) * ((n_k * (n_k + 1)) // 2) * TK * TN * in_elt

    cost = pl.CostEstimate(
        flops=2 * S * M * M,  # true (unpadded) work
        transcendentals=0,
        bytes_accessed=int(
            S_pad * M_pad * in_elt    # eps read
            + lt_hbm_bytes            # Lt read(s)
            + M_pad * 4               # mean read
            + S_pad * M_pad * 4       # f32 output write
        ),
    )

    out_p = pl.pallas_call(
        kernel,
        out_shape=jax.ShapeDtypeStruct((S_pad, M_pad), jnp.float32),
        grid_spec=pltpu.PrefetchScalarGridSpec(
            num_scalar_prefetch=0,
            grid=grid,
            in_specs=in_specs,
            out_specs=out_specs,
        ),
        compiler_params=pltpu.CompilerParams(
            dimension_semantics=dim_sem,
            vmem_limit_bytes=_VMEM_BUDGET,
        ),
        cost_estimate=cost,
    )(eps_p, lt_p, mean_p)

    if (S_pad, M_pad) == (S, M):
        return out_p
    return out_p[:S, :M]


if __name__ == "__main__":
    key = jax.random.PRNGKey(0)
    S = 256  # sample_shape = (256,): batch many draws per call to amortize launch cost
    M = 32   # num inducing points / event size

    # Deterministic "variational distribution" parameters (gpytorch-style init:
    # mean ~ 0, chol ~ identity plus a small deterministic lower-tri perturbation).
    variational_mean = 0.1 * jnp.arange(M, dtype=jnp.float32) / M
    pert = 0.01 * (jnp.arange(M * M, dtype=jnp.float32).reshape(M, M) % 7 - 3.0)
    chol_raw = jnp.eye(M, dtype=jnp.float32) + pert  # tril applied in the wrapper

    # TODO(synk): torch's distribution.rsample draws its own base noise; eps is
    # supplied explicitly here so the kernel stays deterministic and testable.
    eps = jax.random.normal(key, (S, M), dtype=jnp.float32)

    ref = eps @ jnp.tril(chol_raw).T + variational_mean[None, :]

    # f32 path (exact)
    out = jax.block_until_ready(vi_sampler_forward(eps, chol_raw, variational_mean))
    assert out.shape == (S, M)
    assert jnp.allclose(out, ref, atol=1e-5, rtol=1e-5)

    # bf16-input path (f32 accumulation): recommended on v5e/v6e/v7x for bandwidth/MXU rate.
    out_bf16 = jax.block_until_ready(
        vi_sampler_forward(eps, chol_raw, variational_mean, compute_dtype=jnp.bfloat16)
    )
    assert jnp.allclose(out_bf16, ref, atol=5e-2, rtol=5e-2)

    print("KERNEL_OK")
</pallas_src>

<mosaic_0001>
module attributes {stable_mosaic.version = 11 : i64} {
  func.func @_vi_rsample_resident_kernel(%arg0: i32, %arg1: memref<128x128xf32, #tpu.memory_space<vmem>>, %arg2: memref<128x128xf32, #tpu.memory_space<vmem>>, %arg3: memref<1x128xf32, #tpu.memory_space<vmem>>, %arg4: memref<128x128xf32, #tpu.memory_space<vmem>>) attributes {dimension_semantics = [#tpu.dimension_semantics<parallel>], iteration_bounds = array<i64: 2>, scalar_prefetch = 0 : i64, scratch_operands = 0 : i64, tpu.core_type = #tpu.core_type<tc>, window_params = [{transform_indices = @transform_0, window_bounds = array<i64: 128, 128>}, {pipeline_mode = #tpu.pipeline_mode<synchronous>, transform_indices = @transform_1, window_bounds = array<i64: 128, 128>}, {pipeline_mode = #tpu.pipeline_mode<synchronous>, transform_indices = @transform_2, window_bounds = array<i64: 1, 128>}, {transform_indices = @transform_3, window_bounds = array<i64: 128, 128>}]} {
    %c0 = arith.constant 0 : index
    %c0_0 = arith.constant 0 : index
    %0 = vector.load %arg1[%c0, %c0_0] : memref<128x128xf32, #tpu.memory_space<vmem>>, vector<128x128xf32>
    %c0_1 = arith.constant 0 : index
    %c0_2 = arith.constant 0 : index
    %1 = vector.load %arg2[%c0_1, %c0_2] : memref<128x128xf32, #tpu.memory_space<vmem>>, vector<128x128xf32>
    %cst = arith.constant dense<0.000000e+00> : vector<128x128xf32>
    %2 = tpu.matmul %0, %1, %cst {dimension_numbers = #tpu.dot_dimension_numbers<[1], [0], [0], [1], [0, 0, 1, 1], [], []>} : vector<128x128xf32>, vector<128x128xf32>, vector<128x128xf32> -> vector<128x128xf32>
    %c0_3 = arith.constant 0 : index
    %c0_4 = arith.constant 0 : index
    %3 = vector.load %arg3[%c0_3, %c0_4] : memref<1x128xf32, #tpu.memory_space<vmem>>, vector<1x128xf32>
    %4 = vector.broadcast %3 : vector<1x128xf32> to vector<128x128xf32>
    %5 = arith.addf %2, %4 : vector<128x128xf32>
    %c0_5 = arith.constant 0 : index
    %c0_6 = arith.constant 0 : index
    %6 = vector.load %arg4[%c0_5, %c0_6] : memref<128x128xf32, #tpu.memory_space<vmem>>, vector<128x128xf32>
    tpu.vector_store %arg4[%c0_5, %c0_6], %5 {strides = array<i32>} : memref<128x128xf32, #tpu.memory_space<vmem>>, vector<128x128xf32>,
    return
  }
  func.func @transform_0(%arg0: i32) -> (i32, i32) {
    %c0_i32 = arith.constant 0 : i32
    %c0_i32_0 = arith.constant 0 : i32
    return %arg0, %c0_i32 : i32, i32
  }
  func.func @transform_1(%arg0: i32) -> (i32, i32) {
    %c0_i32 = arith.constant 0 : i32
    %c0_i32_0 = arith.constant 0 : i32
    %c0_i32_1 = arith.constant 0 : i32
    return %c0_i32, %c0_i32_0 : i32, i32
  }
  func.func @transform_2(%arg0: i32) -> (i32, i32) {
    %c0_i32 = arith.constant 0 : i32
    %c0_i32_0 = arith.constant 0 : i32
    %c0_i32_1 = arith.constant 0 : i32
    return %c0_i32, %c0_i32_0 : i32, i32
  }
  func.func @transform_3(%arg0: i32) -> (i32, i32) {
    %c0_i32 = arith.constant 0 : i32
    %c0_i32_0 = arith.constant 0 : i32
    return %arg0, %c0_i32 : i32, i32
  }
}

</mosaic_0001>

<llo_original>
// kernel: vi_sampler_forward.1
$region0: #{vi_sampler_forward.1}
  #allocation0 [shape = 'u32[]', space=smem, size = 0x4, offset = 0x4, fixed_abs, tag = 'smem constant byte address 0x4 - core index']
  #allocation1 [shape = 'u32[72,128]{1,0:T(1,128)}', space=vmem, size = 0x9000, scoped, tag = 'internal scratch']
  %s0 = inlined_call_operand.vmem [shape: f32[256,128], index: 0, kind: input, shape index: {}]
  %s1 = inlined_call_operand.vmem [shape: f32[128,128], index: 1, kind: input, shape index: {}]
  %s2 = inlined_call_operand.vmem [shape: f32[1,128], index: 2, kind: input, shape index: {}]
  %s3 = inlined_call_operand.vmem [shape: f32[256,128], index: 3, kind: output, shape index: {}]
  %s4 = sld [smem:[#allocation0]]
  $region45: #{vi_sampler_forward.1} parent=0
    _
  %s6 = ssub.s32 1, %s4
  %s7 = scalar_select 0, %s6, %s4
  loop: start=0, step=1, limit=4
  $region2: #{vi_sampler_forward.1} parent=0 // loop_pre_header
    _
  $region3: #{vi_sampler_forward.1} parent=0 // loop_header
    %s9 = sphi 0, %s13
    %p10 = scmp.ge.s32.totalorder %s9, 4
    %s19 = sphi 0, %s21
    %s22 = sphi 0, %s19
    %s23 = sphi 0, %s22
    %s39 = sphi 0, %s23
    %s43 = sphi 0, %s43
    %s45 = sphi 0, %s43
    %s46 = sphi 0, %s45
    %s60 = sphi 0, %s46
    %s64 = sphi 0, %s64
    %s66 = sphi 0, %s64
    %s67 = sphi 0, %s66
    %s81 = sphi 0, %s67
    %s87 = sphi 0, %s89
    %s90 = sphi 0, %s87
    %s91 = sphi 0, %s90
    %s107 = sphi 0, %s91
  $region4: #{vi_sampler_forward.1} parent=0 // loop_header_branch
    %12 = sbr.rel (%p10) target = $region8
  $region5: #{vi_sampler_forward.1} parent=0 // loop_body
    %s14 = ssub.s32 %s9, 1
    %s15 = ssub.s32 %s9, 2
    %s16 = sadd.s32 %s9, 1
    %s17 = ssub.s32 %s9, %s16
    %p18 = scmp.eq.s32.totalorder %s17, 0
    %s20 = sadd.s32 %s19, 1
    %s21 = scalar_select %p18, %s19, %s20
    %p24 = pneg %p18
    %p25 = scmp.eq.s32.totalorder %s9, 1
    %p26 = por %p24, %p25
    %p27 = scmp.ne.s32.totalorder %s19, %s22
    %p28 = scmp.eq.s32.totalorder %s9, 0
    %p29 = por %p27, %p28
    %p30 = scmp.ne.s32.totalorder %s19, %s22
    %p31 = scmp.eq.s32.totalorder %s14, 1
    %p32 = por %p30, %p31
    %p33 = scmp.ne.s32.totalorder %s22, %s23
    %p34 = scmp.eq.s32.totalorder %s14, 0
    %p35 = por %p33, %p34
    %p36 = scmp.ne.s32.totalorder %s22, %s23
    %p37 = scmp.eq.s32.totalorder %s15, 1
    %p38 = por %p36, %p37
    %p40 = scmp.ne.s32.totalorder %s23, %s39
    %p41 = scmp.eq.s32.totalorder %s15, 0
    %p42 = por %p40, %p41
    %s44 = sadd.s32 %s43, 1
    %p47 = scmp.eq.s32.totalorder %s9, 1
    %p48 = scmp.ne.s32.totalorder %s43, %s45
    %p49 = scmp.eq.s32.totalorder %s9, 0
    %p50 = por %p48, %p49
    %p51 = scmp.ne.s32.totalorder %s43, %s45
    %p52 = scmp.eq.s32.totalorder %s14, 1
    %p53 = por %p51, %p52
    %p54 = scmp.ne.s32.totalorder %s45, %s46
    %p55 = scmp.eq.s32.totalorder %s14, 0
    %p56 = por %p54, %p55
    %p57 = scmp.ne.s32.totalorder %s45, %s46
    %p58 = scmp.eq.s32.totalorder %s15, 1
    %p59 = por %p57, %p58
    %p61 = scmp.ne.s32.totalorder %s46, %s60
    %p62 = scmp.eq.s32.totalorder %s15, 0
    %p63 = por %p61, %p62
    %s65 = sadd.s32 %s64, 1
    %p68 = scmp.eq.s32.totalorder %s9, 1
    %p69 = scmp.ne.s32.totalorder %s64, %s66
    %p70 = scmp.eq.s32.totalorder %s9, 0
    %p71 = por %p69, %p70
    %p72 = scmp.ne.s32.totalorder %s64, %s66
    %p73 = scmp.eq.s32.totalorder %s14, 1
    %p74 = por %p72, %p73
    %p75 = scmp.ne.s32.totalorder %s66, %s67
    %p76 = scmp.eq.s32.totalorder %s14, 0
    %p77 = por %p75, %p76
    %p78 = scmp.ne.s32.totalorder %s66, %s67
    %p79 = scmp.eq.s32.totalorder %s15, 1
    %p80 = por %p78, %p79
    %p82 = scmp.ne.s32.totalorder %s67, %s81
    %p83 = scmp.eq.s32.totalorder %s15, 0
    %p84 = por %p82, %p83
    %s85 = ssub.s32 %s9, %s16
    %p86 = scmp.eq.s32.totalorder %s85, 0
    %s88 = sadd.s32 %s87, 1
    %s89 = scalar_select %p86, %s87, %s88
    %p92 = pneg %p86
    %p93 = scmp.eq.s32.totalorder %s9, 1
    %p94 = por %p92, %p93
    %p95 = scmp.ne.s32.totalorder %s87, %s90
    %p96 = scmp.eq.s32.totalorder %s9, 0
    %p97 = por %p95, %p96
    %p98 = scmp.ne.s32.totalorder %s87, %s90
    %p99 = scmp.eq.s32.totalorder %s14, 1
    %p100 = por %p98, %p99
    %p101 = scmp.ne.s32.totalorder %s90, %s91
    %p102 = scmp.eq.s32.totalorder %s14, 0
    %p103 = por %p101, %p102
    %p104 = scmp.ne.s32.totalorder %s90, %s91
    %p105 = scmp.eq.s32.totalorder %s15, 1
    %p106 = por %p104, %p105
    %p108 = scmp.ne.s32.totalorder %s91, %s107
    %p109 = scmp.eq.s32.totalorder %s15, 0
    %p110 = por %p108, %p109
    %p111 = scmp.le.s32.totalorder 1, %s9
    %p112 = scmp.lt.s32.totalorder %s9, 3
    %p113 = pnand %p111, %p112
    %p114 = pneg %p113
    // Predicated region
    $region9: #{vi_sampler_forward.1} parent=5 // pred_check
      _
    $region10: #{vi_sampler_forward.1} parent=5 // pred_check_branch
      %116 = sbr.rel (%p113) target = $region12
    $region11: #{vi_sampler_forward.1} parent=5 // pred_region
      %s117 = ssub.s32 %s9, 1
      // Predicated region
      $region13: #{vi_sampler_forward.1} parent=11 // pred_check
        %p118 = pneg %p56
      $region14: #{vi_sampler_forward.1} parent=11 // pred_check_branch
        %120 = sbr.rel (%p118) target = $region16
      $region15: #{vi_sampler_forward.1} parent=11 // pred_region
        _
      $region16: #{vi_sampler_forward.1} parent=11 // pred_fallthru
        _
      // Predicated region
      $region17: #{vi_sampler_forward.1} parent=11 // pred_check
        %p121 = pneg %p77
      $region18: #{vi_sampler_forward.1} parent=11 // pred_check_branch
        %123 = sbr.rel (%p121) target = $region20
      $region19: #{vi_sampler_forward.1} parent=11 // pred_region
        _
      $region20: #{vi_sampler_forward.1} parent=11 // pred_fallthru
        _
    $region12: #{vi_sampler_forward.1} parent=5 // pred_fallthru
      _
    %p124 = scmp.lt.s32.totalorder %s9, 2
    // Predicated region
    $region21: #{vi_sampler_forward.1} parent=5 // pred_check
      %p125 = pneg %p124
    $region22: #{vi_sampler_forward.1} parent=5 // pred_check_branch
      %127 = sbr.rel (%p125) target = $region24
    $region23: #{vi_sampler_forward.1} parent=5 // pred_region
      // Predicated region
      $region25: #{vi_sampler_forward.1} parent=23 // pred_check
        %p128 = pneg %p29
      $region26: #{vi_sampler_forward.1} parent=23 // pred_check_branch
        %130 = sbr.rel (%p128) target = $region28
      $region27: #{vi_sampler_forward.1} parent=23 // pred_region
        %s131 = smul.u32 16, %s9
        %p132 = scmp.lt.s32.totalorder %s131, 31
        %s133 = scalar_select %p132, %s131, 31
        %s134 = smul.addr %s133, 8
        %s135 = scalar_lea.vmem %s0, %s134
        %s136 = smul.u32 16, %s9
      $region28: #{vi_sampler_forward.1} parent=23 // pred_fallthru
        _
    $region24: #{vi_sampler_forward.1} parent=5 // pred_fallthru
      _
    %p137 = scmp.le.s32.totalorder 1, %s9
    %p138 = scmp.lt.s32.totalorder %s9, 3
    %p139 = pnand %p137, %p138
    %p140 = pneg %p139
    // Predicated region
    $region29: #{vi_sampler_forward.1} parent=5 // pred_check
      _
    $region30: #{vi_sampler_forward.1} parent=5 // pred_check_branch
      %142 = sbr.rel (%p139) target = $region32
    $region31: #{vi_sampler_forward.1} parent=5 // pred_region
      %s143 = ssub.s32 %s9, 1
      %s144 = smul.u32 16, %s14
      %p145 = scmp.lt.s32.totalorder %s144, 31
      %s146 = scalar_select %p145, %s144, 31
      %s147 = smul.addr %s146, 8
      %s148 = scalar_lea.vmem %s0, %s147
      %p149 = pneg %p35
      %p150 = pneg %p32
      %p151 = pneg %p56
      %p152 = pneg %p53
      %p153 = pneg %p77
      %p154 = pneg %p74
      %p155 = pneg %p103
      %p156 = pneg %p100
      %s157 = smul.u32 16, %s14
      %p158 = scmp.lt.s32.totalorder %s157, 31
      %s159 = scalar_select %p158, %s157, 31
      %s160 = smul.addr %s159, 8
      %s161 = scalar_lea.vmem %s3, %s160
      %s162 = smul.u32 16, %s14
      %p163 = scmp.lt.s32.totalorder %s162, 31
      %s164 = scalar_select %p163, %s162, 31
      %s165 = smul.addr %s164, 8
      %s166 = scalar_lea.vmem %s0, %s165
      %s167 = smul.u32 16, %s14
      %s168 = smul.u32 16, %s14
      %p169 = scmp.lt.s32.totalorder %s168, 31
      %s170 = scalar_select %p169, %s168, 31
      %s171 = smul.addr %s170, 8
      %s172 = scalar_lea.vmem %s3, %s171
      %s173 = smul.u32 16, %s14
      %v174 = vld [vmem:[%s166] sm:$0xff]
      %v175 = vld [vmem:[%s166 + $0x8] sm:$0xff]
      %v176 = vld [vmem:[%s166 + $0x10] sm:$0xff]
      %v177 = vld [vmem:[%s166 + $0x18] sm:$0xff]
      %v178 = vld [vmem:[%s166 + $0x20] sm:$0xff]
      %v179 = vld [vmem:[%s166 + $0x28] sm:$0xff]
      %v180 = vld [vmem:[%s166 + $0x30] sm:$0xff]
      %v181 = vld [vmem:[%s166 + $0x38] sm:$0xff]
      %v182 = vld [vmem:[%s166 + $0x40] sm:$0xff]
      %v183 = vld [vmem:[%s166 + $0x48] sm:$0xff]
      %v184 = vld [vmem:[%s166 + $0x50] sm:$0xff]
      %v185 = vld [vmem:[%s166 + $0x58] sm:$0xff]
      %v186 = vld [vmem:[%s166 + $0x60] sm:$0xff]
      %v187 = vld [vmem:[%s166 + $0x68] sm:$0xff]
      %v188 = vld [vmem:[%s166 + $0x70] sm:$0xff]
      %v189 = vld [vmem:[%s166 + $0x78] sm:$0xff]
      %v190 = vld [vmem:[%s1] sm:$0xff]
      %v191 = vld [vmem:[%s1 + $0x8] sm:$0xff]
      %v192 = vld [vmem:[%s1 + $0x10] sm:$0xff]
      %v193 = vld [vmem:[%s1 + $0x18] sm:$0xff]
      %v194 = vld [vmem:[%s1 + $0x20] sm:$0xff]
      %v195 = vld [vmem:[%s1 + $0x28] sm:$0xff]
      %v196 = vld [vmem:[%s1 + $0x30] sm:$0xff]
      %v197 = vld [vmem:[%s1 + $0x38] sm:$0xff]
      %v198 = vld [vmem:[%s1 + $0x40] sm:$0xff]
      %v199 = vld [vmem:[%s1 + $0x48] sm:$0xff]
      %v200 = vld [vmem:[%s1 + $0x50] sm:$0xff]
      %v201 = vld [vmem:[%s1 + $0x58] sm:$0xff]
      %v202 = vld [vmem:[%s1 + $0x60] sm:$0xff]
      %v203 = vld [vmem:[%s1 + $0x68] sm:$0xff]
      %v204 = vld [vmem:[%s1 + $0x70] sm:$0xff]
      %v205 = vld [vmem:[%s1 + $0x78] sm:$0xff]
      %v206 = vld [vmem:[%s2] sm:$0x1]
      %v208 = vperm.slane %v206, 0
      %210 = vmatpush.msra.mxu0 %v205
      %211 = vmatpush.msra.mxu0 %v204
      %212 = vmatpush.msra.mxu0 %v203
      %213 = vmatpush.msra.mxu0 %v202
      %214 = vmatpush.msra.mxu0 %v201
      %215 = vmatpush.msra.mxu0 %v200
      %216 = vmatpush.msra.mxu0 %v199
      %217 = vmatpush.msra.mxu0 %v198
      %218 = vmatpush.msra.mxu0 %v197
      %219 = vmatpush.msra.mxu0 %v196
      %220 = vmatpush.msra.mxu0 %v195
      %221 = vmatpush.msra.mxu0 %v194
      %222 = vmatpush.msra.mxu0 %v193
      %223 = vmatpush.msra.mxu0 %v192
      %224 = vmatpush.msra.mxu0 %v191
      %225 = vmatpush.msra.mxu0 %v190
      %226 = vmatmul.f32.gmra.mxu0 %v174
      %v227 = vpop.f32.mrf.mxu0
      %v228 = vadd.f32 %v208, %v227
      %229 = vmatmul.f32.gmra.mxu0 %v175
      %v230 = vpop.f32.mrf.mxu0
      %v231 = vadd.f32 %v208, %v230
      %232 = vmatmul.f32.gmra.mxu0 %v176
      %v233 = vpop.f32.mrf.mxu0
      %v234 = vadd.f32 %v208, %v233
      %235 = vmatmul.f32.gmra.mxu0 %v177
      %v236 = vpop.f32.mrf.mxu0
      %v237 = vadd.f32 %v208, %v236
      %238 = vmatmul.f32.gmra.mxu0 %v178
      %v239 = vpop.f32.mrf.mxu0
      %v240 = vadd.f32 %v208, %v239
      %241 = vmatmul.f32.gmra.mxu0 %v179
      %v242 = vpop.f32.mrf.mxu0
      %v243 = vadd.f32 %v208, %v242
      %244 = vmatmul.f32.gmra.mxu0 %v180
      %v245 = vpop.f32.mrf.mxu0
      %v246 = vadd.f32 %v208, %v245
      %247 = vmatmul.f32.gmra.mxu0 %v181
      %v248 = vpop.f32.mrf.mxu0
      %v249 = vadd.f32 %v208, %v248
      %250 = vmatmul.f32.gmra.mxu0 %v182
      %v251 = vpop.f32.mrf.mxu0
      %v252 = vadd.f32 %v208, %v251
      %253 = vmatmul.f32.gmra.mxu0 %v183
      %v254 = vpop.f32.mrf.mxu0
      %v255 = vadd.f32 %v208, %v254
      %256 = vmatmul.f32.gmra.mxu0 %v184
      %v257 = vpop.f32.mrf.mxu0
      %v258 = vadd.f32 %v208, %v257
      %259 = vmatmul.f32.gmra.mxu0 %v185
      %v260 = vpop.f32.mrf.mxu0
      %v261 = vadd.f32 %v208, %v260
      %262 = vmatmul.f32.gmra.mxu0 %v186
      %v263 = vpop.f32.mrf.mxu0
      %v264 = vadd.f32 %v208, %v263
      %265 = vmatmul.f32.gmra.mxu0 %v187
      %v266 = vpop.f32.mrf.mxu0
      %v267 = vadd.f32 %v208, %v266
      %268 = vmatmul.f32.gmra.mxu0 %v188
      %v269 = vpop.f32.mrf.mxu0
      %v270 = vadd.f32 %v208, %v269
      %271 = vmatmul.f32.gmra.mxu0 %v189
      %v272 = vpop.f32.mrf.mxu0
      %v273 = vadd.f32 %v208, %v272
      %274 = vdwg.mxu0
      %275 = vst [vmem:[%s172] sm:$0xff] %v228
      %276 = vst [vmem:[%s172 + $0x8] sm:$0xff] %v231
      %277 = vst [vmem:[%s172 + $0x10] sm:$0xff] %v234
      %278 = vst [vmem:[%s172 + $0x18] sm:$0xff] %v237
      %279 = vst [vmem:[%s172 + $0x20] sm:$0xff] %v240
      %280 = vst [vmem:[%s172 + $0x28] sm:$0xff] %v243
      %281 = vst [vmem:[%s172 + $0x30] sm:$0xff] %v246
      %282 = vst [vmem:[%s172 + $0x38] sm:$0xff] %v249
      %283 = vst [vmem:[%s172 + $0x40] sm:$0xff] %v252
      %284 = vst [vmem:[%s172 + $0x48] sm:$0xff] %v255
      %285 = vst [vmem:[%s172 + $0x50] sm:$0xff] %v258
      %286 = vst [vmem:[%s172 + $0x58] sm:$0xff] %v261
      %287 = vst [vmem:[%s172 + $0x60] sm:$0xff] %v264
      %288 = vst [vmem:[%s172 + $0x68] sm:$0xff] %v267
      %289 = vst [vmem:[%s172 + $0x70] sm:$0xff] %v270
      %290 = vst [vmem:[%s172 + $0x78] sm:$0xff] %v273
      %s291 = smul.u32 16, %s14
      %p292 = scmp.lt.s32.totalorder %s291, 31
      %s293 = scalar_select %p292, %s291, 31
      %s294 = smul.addr %s293, 8
      %s295 = scalar_lea.vmem %s3, %s294
      // Predicated region
      $region33: #{vi_sampler_forward.1} parent=31 // pred_check
        %p296 = pneg %p100
      $region34: #{vi_sampler_forward.1} parent=31 // pred_check_branch
        %298 = sbr.rel (%p296) target = $region36
      $region35: #{vi_sampler_forward.1} parent=31 // pred_region
        %s299 = smul.u32 16, %s14
      $region36: #{vi_sampler_forward.1} parent=31 // pred_fallthru
        _
    $region32: #{vi_sampler_forward.1} parent=5 // pred_fallthru
      _
    %p300 = scmp.le.s32.totalorder 2, %s9
    // Predicated region
    $region37: #{vi_sampler_forward.1} parent=5 // pred_check
      %p301 = pneg %p300
    $region38: #{vi_sampler_forward.1} parent=5 // pred_check_branch
      %303 = sbr.rel (%p301) target = $region40
    $region39: #{vi_sampler_forward.1} parent=5 // pred_region
      %s304 = ssub.s32 %s9, 2
      // Predicated region
      $region41: #{vi_sampler_forward.1} parent=39 // pred_check
        %p305 = pneg %p106
      $region42: #{vi_sampler_forward.1} parent=39 // pred_check_branch
        %307 = sbr.rel (%p305) target = $region44
      $region43: #{vi_sampler_forward.1} parent=39 // pred_region
        %s308 = smul.u32 16, %s15
        %p309 = scmp.lt.s32.totalorder %s308, 31
        %s310 = scalar_select %p309, %s308, 31
        %s311 = smul.addr %s310, 8
        %s312 = scalar_lea.vmem %s3, %s311
      $region44: #{vi_sampler_forward.1} parent=39 // pred_fallthru
        _
    $region40: #{vi_sampler_forward.1} parent=5 // pred_fallthru
      _
  $region6: #{vi_sampler_forward.1} parent=0 // loop_footer
    %s13 = sadd.s32 1, %s9
  $region7: #{vi_sampler_forward.1} parent=0 // loop_footer_branch
    %8 = sbr.rel target = $region3
  $region8: #{vi_sampler_forward.1} parent=0 // loop_exit
    _

</llo_original>
